<compile_context>
chip_gen: v6e
topology: v6e:2x2x1
jax: 0.10.0
libtpu: 0.0.40
codegen_flags: <defaults>
</compile_context>

<pallas_src>
import jax
import jax.numpy as jnp
from jax.experimental import pallas as pl
from jax.experimental.pallas import tpu as pltpu

LANES = 128                     # lane width (last dim)
TM_MAX = 8192                   # max sublane rows per grid step
VMEM_LIMIT = 32 * 1024 * 1024   # scoped VMEM: 2 inputs x 2 bufs x tile fits easily
SMALL_INPUT_ELEMS = 1 << 20     # below this, plain fused XLA beats pallas_call


def _num_tensorcores() -> int:
    """2 on multi-TensorCore chips (v7x), else 1.

    On 1-TC chips (v5e/v6e) a leading 'parallel' axis is just a serial outer
    loop that shrinks tm for zero parallelism, so we only split on v7x.
    """
    try:
        kind = jax.devices()[0].device_kind.lower()
    except Exception:
        return 1
    # TODO(synk): if an xprof trace on v7x shows only one TC busy with plain
    # "parallel", switch the leading axis to pltpu.CORE_PARALLEL (or use
    # pl.core_map over pltpu.create_tensorcore_mesh).
    return 2 if ("v7" in kind or "7x" in kind) else 1


def _sum_loss_kernel(p_ref, t_ref, mse_ref, l1_ref, bce_ref):
    i = pl.program_id(1)

    @pl.when(i == 0)
    def _init():
        mse_ref[...] = jnp.zeros_like(mse_ref)
        l1_ref[...] = jnp.zeros_like(l1_ref)
        bce_ref[...] = jnp.zeros_like(bce_ref)

    p = p_ref[...].astype(jnp.float32)
    t = t_ref[...].astype(jnp.float32)

    d = p - t
    sq = d * d
    ab = jnp.abs(d)
    # numerically stable BCE-with-logits: max(p,0) - p*t + log1p(exp(-|p|))
    bce = jnp.maximum(p, 0.0) - p * t + jnp.log1p(jnp.exp(-jnp.abs(p)))

    # (tm,128) -> (tm//8, 8, 128); sum over the leading axis = cross-vreg VALU
    # adds into the (8,128) resident accumulator tile (no per-step XLU reduce).
    mse_ref[...] += jnp.sum(sq.reshape(-1, 8, LANES), axis=0)
    l1_ref[...] += jnp.sum(ab.reshape(-1, 8, LANES), axis=0)
    bce_ref[...] += jnp.sum(bce.reshape(-1, 8, LANES), axis=0)


def _partial_sums(p, t):
    """Plain-jnp per-loss partial *sums* (not means) over flat slices."""
    p = p.astype(jnp.float32)
    t = t.astype(jnp.float32)
    d = p - t
    mse = jnp.sum(d * d)
    l1 = jnp.sum(jnp.abs(d))
    bce = jnp.sum(jnp.maximum(p, 0.0) - p * t + jnp.log1p(jnp.exp(-jnp.abs(p))))
    return mse, l1, bce


def sum_loss(pred, target, *, small_input_threshold=SMALL_INPUT_ELEMS):
    """Pallas SumLoss(MSELoss(), L1Loss(), BCEWithLogitsLoss()) forward."""
    assert pred.shape == target.shape
    n = pred.size
    inv_n = 1.0 / n

    flat_p = pred.reshape(-1)
    flat_t = target.reshape(-1)

    # Min sublane multiple for the input dtype: f32 -> 8, bf16 -> 16, 8-bit -> 32.
    itemsize = jnp.dtype(pred.dtype).itemsize
    sub = max(8, 32 // max(1, itemsize))

    ncores = _num_tensorcores()
    n_rows = n // LANES

    def _tiling(nc):
        tm = min(TM_MAX, (n_rows // nc) // sub * sub)
        blocks = n_rows // (nc * tm) if tm >= sub else 0
        return tm, blocks

    tm, blocks_per_core = _tiling(ncores)
    if blocks_per_core == 0 and ncores > 1:
        ncores = 1
        tm, blocks_per_core = _tiling(ncores)

    # Small / untileable inputs: pallas_call fixed overhead dominates -> fused XLA.
    if blocks_per_core == 0 or n < small_input_threshold:
        mse_s, l1_s, bce_s = _partial_sums(flat_p, flat_t)
        return (mse_s + l1_s + bce_s) * inv_n

    rows_main = ncores * blocks_per_core * tm
    n_main = rows_main * LANES

    # Exactly-tiling prefix (no pad, no in-kernel mask).  For the common
    # aligned case this is the whole array and the reshape is free.
    p2 = flat_p[:n_main].reshape(rows_main, LANES)
    t2 = flat_t[:n_main].reshape(rows_main, LANES)

    in_spec = pl.BlockSpec((tm, LANES), lambda c, i: (c * blocks_per_core + i, 0))
    # One lane-dense (8,128) partial-sum block per core per loss, resident
    # across the inner ('arbitrary') reduction axis.
    out_spec = pl.BlockSpec((None, 8, LANES), lambda c, i: (c, 0, 0))
    out_shape = jax.ShapeDtypeStruct((ncores, 8, LANES), jnp.float32)

    mse_o, l1_o, bce_o = pl.pallas_call(
        _sum_loss_kernel,
        out_shape=[out_shape, out_shape, out_shape],
        grid_spec=pltpu.PrefetchScalarGridSpec(
            num_scalar_prefetch=0,
            grid=(ncores, blocks_per_core),
            in_specs=[in_spec, in_spec],
            out_specs=[out_spec, out_spec, out_spec],
        ),
        compiler_params=pltpu.CompilerParams(
            dimension_semantics=("parallel", "arbitrary"),
            vmem_limit_bytes=VMEM_LIMIT),
    )(p2, t2)

    mse_s = jnp.sum(mse_o)
    l1_s = jnp.sum(l1_o)
    bce_s = jnp.sum(bce_o)

    # Ragged tail (< ncores*tm*128 elements): fold in with plain jnp.
    if n_main < n:
        t_mse, t_l1, t_bce = _partial_sums(flat_p[n_main:], flat_t[n_main:])
        mse_s = mse_s + t_mse
        l1_s = l1_s + t_l1
        bce_s = bce_s + t_bce

    # mean of each loss, then summed (matches SumLoss.forward accumulation)
    return (mse_s + l1_s + bce_s) * inv_n


def _reference_sum_loss(pred, target):
    p = pred.astype(jnp.float32)
    t = target.astype(jnp.float32)
    mse = jnp.mean((p - t) ** 2)
    l1 = jnp.mean(jnp.abs(p - t))
    bce = jnp.mean(jnp.maximum(p, 0.0) - p * t + jnp.log1p(jnp.exp(-jnp.abs(p))))
    return mse + l1 + bce


if __name__ == "__main__":
    key = jax.random.PRNGKey(0)
    k_pred, k_tgt = jax.random.split(key)
    # pred = logits, target = ground-truth mask in [0, 1]  (NCHW)
    pred = jax.random.normal(k_pred, (2, 4, 16, 16), dtype=jnp.float32)
    target = jax.random.uniform(k_tgt, (2, 4, 16, 16), dtype=jnp.float32)

    # Force the Pallas path at demo size (default threshold routes tiny tensors
    # to the fused-XLA fast path).
    out = jax.block_until_ready(sum_loss(pred, target, small_input_threshold=0))
    ref = jax.block_until_ready(_reference_sum_loss(pred, target))
    assert jnp.allclose(out, ref, rtol=1e-5, atol=1e-5), (out, ref)

    # Ragged shape: exercises the wrapper-side tail handling (no pad, no mask).
    pred_r = jax.random.normal(k_pred, (3, 5, 7, 11), dtype=jnp.float32)
    target_r = jax.random.uniform(k_tgt, (3, 5, 7, 11), dtype=jnp.float32)
    out_r = jax.block_until_ready(sum_loss(pred_r, target_r, small_input_threshold=0))
    ref_r = jax.block_until_ready(_reference_sum_loss(pred_r, target_r))
    assert jnp.allclose(out_r, ref_r, rtol=1e-5, atol=1e-5), (out_r, ref_r)

    # Default call (small-input fast path) must agree as well.
    out_fp = jax.block_until_ready(sum_loss(pred, target))
    assert jnp.allclose(out_fp, ref, rtol=1e-5, atol=1e-5), (out_fp, ref)

    print("KERNEL_OK")
</pallas_src>

<mosaic_0001>
module attributes {stable_mosaic.version = 11 : i64} {
  func.func @_sum_loss_kernel(%arg0: i32, %arg1: i32, %arg2: memref<16x128xf32, #tpu.memory_space<vmem>>, %arg3: memref<16x128xf32, #tpu.memory_space<vmem>>, %arg4: memref<1x8x128xf32, #tpu.memory_space<vmem>>, %arg5: memref<1x8x128xf32, #tpu.memory_space<vmem>>, %arg6: memref<1x8x128xf32, #tpu.memory_space<vmem>>) attributes {dimension_semantics = [#tpu.dimension_semantics<parallel>, #tpu.dimension_semantics<arbitrary>], iteration_bounds = array<i64: 1, 1>, scalar_prefetch = 0 : i64, scratch_operands = 0 : i64, tpu.core_type = #tpu.core_type<tc>, window_params = [{transform_indices = @transform_0, window_bounds = array<i64: 16, 128>}, {transform_indices = @transform_1, window_bounds = array<i64: 16, 128>}, {transform_indices = @transform_2, window_bounds = array<i64: 1, 8, 128>}, {transform_indices = @transform_3, window_bounds = array<i64: 1, 8, 128>}, {transform_indices = @transform_4, window_bounds = array<i64: 1, 8, 128>}]} {
    %c0_i32 = arith.constant 0 : i32
    %0 = arith.cmpi eq, %arg1, %c0_i32 : i32
    %1 = arith.extui %0 : i1 to i32
    %c0_i32_0 = arith.constant 0 : i32
    %2 = arith.cmpi ne, %1, %c0_i32_0 : i32
    scf.if %2 {
      %cst_26 = arith.constant 0.000000e+00 : f32
      %42 = vector.broadcast %cst_26 : f32 to vector<8x128xf32>
      %c0_27 = arith.constant 0 : index
      %c0_28 = arith.constant 0 : index
      %c0_29 = arith.constant 0 : index
      %43 = vector.load %arg4[%c0_27, %c0_28, %c0_29] : memref<1x8x128xf32, #tpu.memory_space<vmem>>, vector<1x8x128xf32>
      %44 = vector.shape_cast %43 : vector<1x8x128xf32> to vector<8x128xf32>
      %45 = vector.shape_cast %42 : vector<8x128xf32> to vector<1x8x128xf32>
      tpu.vector_store %arg4[%c0_27, %c0_28, %c0_29], %45 {strides = array<i32>} : memref<1x8x128xf32, #tpu.memory_space<vmem>>, vector<1x8x128xf32>,
      %cst_30 = arith.constant 0.000000e+00 : f32
      %46 = vector.broadcast %cst_30 : f32 to vector<8x128xf32>
      %c0_31 = arith.constant 0 : index
      %c0_32 = arith.constant 0 : index
      %c0_33 = arith.constant 0 : index
      %47 = vector.load %arg5[%c0_31, %c0_32, %c0_33] : memref<1x8x128xf32, #tpu.memory_space<vmem>>, vector<1x8x128xf32>
      %48 = vector.shape_cast %47 : vector<1x8x128xf32> to vector<8x128xf32>
      %49 = vector.shape_cast %46 : vector<8x128xf32> to vector<1x8x128xf32>
      tpu.vector_store %arg5[%c0_31, %c0_32, %c0_33], %49 {strides = array<i32>} : memref<1x8x128xf32, #tpu.memory_space<vmem>>, vector<1x8x128xf32>,
      %cst_34 = arith.constant 0.000000e+00 : f32
      %50 = vector.broadcast %cst_34 : f32 to vector<8x128xf32>
      %c0_35 = arith.constant 0 : index
      %c0_36 = arith.constant 0 : index
      %c0_37 = arith.constant 0 : index
      %51 = vector.load %arg6[%c0_35, %c0_36, %c0_37] : memref<1x8x128xf32, #tpu.memory_space<vmem>>, vector<1x8x128xf32>
      %52 = vector.shape_cast %51 : vector<1x8x128xf32> to vector<8x128xf32>
      %53 = vector.shape_cast %50 : vector<8x128xf32> to vector<1x8x128xf32>
      tpu.vector_store %arg6[%c0_35, %c0_36, %c0_37], %53 {strides = array<i32>} : memref<1x8x128xf32, #tpu.memory_space<vmem>>, vector<1x8x128xf32>,
    } else {
    }
    %c0 = arith.constant 0 : index
    %c0_1 = arith.constant 0 : index
    %3 = vector.load %arg2[%c0, %c0_1] : memref<16x128xf32, #tpu.memory_space<vmem>>, vector<16x128xf32>
    %c0_2 = arith.constant 0 : index
    %c0_3 = arith.constant 0 : index
    %4 = vector.load %arg3[%c0_2, %c0_3] : memref<16x128xf32, #tpu.memory_space<vmem>>, vector<16x128xf32>
    %5 = arith.subf %3, %4 : vector<16x128xf32>
    %6 = arith.mulf %5, %5 : vector<16x128xf32>
    %7 = math.absf %5 : vector<16x128xf32>
    %cst = arith.constant 0.000000e+00 : f32
    %8 = vector.broadcast %cst : f32 to vector<16x128xf32>
    %9 = arith.maximumf %3, %8 : vector<16x128xf32>
    %10 = arith.mulf %3, %4 : vector<16x128xf32>
    %11 = arith.subf %9, %10 : vector<16x128xf32>
    %12 = math.absf %3 : vector<16x128xf32>
    %cst_4 = arith.constant 0.000000e+00 : f32
    %13 = vector.broadcast %cst_4 : f32 to vector<16x128xf32>
    %14 = arith.subf %13, %12 : vector<16x128xf32>
    %15 = math.exp %14 : vector<16x128xf32>
    %16 = math.log1p %15 : vector<16x128xf32>
    %17 = arith.addf %11, %16 : vector<16x128xf32>
    %c0_5 = arith.constant 0 : index
    %c0_6 = arith.constant 0 : index
    %c0_7 = arith.constant 0 : index
    %18 = vector.load %arg4[%c0_5, %c0_6, %c0_7] : memref<1x8x128xf32, #tpu.memory_space<vmem>>, vector<1x8x128xf32>
    %19 = vector.shape_cast %18 : vector<1x8x128xf32> to vector<8x128xf32>
    %20 = vector.shape_cast %6 : vector<16x128xf32> to vector<2x8x128xf32>
    %cst_8 = arith.constant dense<0.000000e+00> : vector<8x128xf32>
    %21 = vector.multi_reduction <add>, %20, %cst_8 [0] : vector<2x8x128xf32> to vector<8x128xf32>
    %22 = arith.addf %19, %21 : vector<8x128xf32>
    %c0_9 = arith.constant 0 : index
    %c0_10 = arith.constant 0 : index
    %c0_11 = arith.constant 0 : index
    %23 = vector.load %arg4[%c0_9, %c0_10, %c0_11] : memref<1x8x128xf32, #tpu.memory_space<vmem>>, vector<1x8x128xf32>
    %24 = vector.shape_cast %23 : vector<1x8x128xf32> to vector<8x128xf32>
    %25 = vector.shape_cast %22 : vector<8x128xf32> to vector<1x8x128xf32>
    tpu.vector_store %arg4[%c0_9, %c0_10, %c0_11], %25 {strides = array<i32>} : memref<1x8x128xf32, #tpu.memory_space<vmem>>, vector<1x8x128xf32>,
    %c0_12 = arith.constant 0 : index
    %c0_13 = arith.constant 0 : index
    %c0_14 = arith.constant 0 : index
    %26 = vector.load %arg5[%c0_12, %c0_13, %c0_14] : memref<1x8x128xf32, #tpu.memory_space<vmem>>, vector<1x8x128xf32>
    %27 = vector.shape_cast %26 : vector<1x8x128xf32> to vector<8x128xf32>
    %28 = vector.shape_cast %7 : vector<16x128xf32> to vector<2x8x128xf32>
    %cst_15 = arith.constant dense<0.000000e+00> : vector<8x128xf32>
    %29 = vector.multi_reduction <add>, %28, %cst_15 [0] : vector<2x8x128xf32> to vector<8x128xf32>
    %30 = arith.addf %27, %29 : vector<8x128xf32>
    %c0_16 = arith.constant 0 : index
    %c0_17 = arith.constant 0 : index
    %c0_18 = arith.constant 0 : index
    %31 = vector.load %arg5[%c0_16, %c0_17, %c0_18] : memref<1x8x128xf32, #tpu.memory_space<vmem>>, vector<1x8x128xf32>
    %32 = vector.shape_cast %31 : vector<1x8x128xf32> to vector<8x128xf32>
    %33 = vector.shape_cast %30 : vector<8x128xf32> to vector<1x8x128xf32>
    tpu.vector_store %arg5[%c0_16, %c0_17, %c0_18], %33 {strides = array<i32>} : memref<1x8x128xf32, #tpu.memory_space<vmem>>, vector<1x8x128xf32>,
    %c0_19 = arith.constant 0 : index
    %c0_20 = arith.constant 0 : index
    %c0_21 = arith.constant 0 : index
    %34 = vector.load %arg6[%c0_19, %c0_20, %c0_21] : memref<1x8x128xf32, #tpu.memory_space<vmem>>, vector<1x8x128xf32>
    %35 = vector.shape_cast %34 : vector<1x8x128xf32> to vector<8x128xf32>
    %36 = vector.shape_cast %17 : vector<16x128xf32> to vector<2x8x128xf32>
    %cst_22 = arith.constant dense<0.000000e+00> : vector<8x128xf32>
    %37 = vector.multi_reduction <add>, %36, %cst_22 [0] : vector<2x8x128xf32> to vector<8x128xf32>
    %38 = arith.addf %35, %37 : vector<8x128xf32>
    %c0_23 = arith.constant 0 : index
    %c0_24 = arith.constant 0 : index
    %c0_25 = arith.constant 0 : index
    %39 = vector.load %arg6[%c0_23, %c0_24, %c0_25] : memref<1x8x128xf32, #tpu.memory_space<vmem>>, vector<1x8x128xf32>
    %40 = vector.shape_cast %39 : vector<1x8x128xf32> to vector<8x128xf32>
    %41 = vector.shape_cast %38 : vector<8x128xf32> to vector<1x8x128xf32>
    tpu.vector_store %arg6[%c0_23, %c0_24, %c0_25], %41 {strides = array<i32>} : memref<1x8x128xf32, #tpu.memory_space<vmem>>, vector<1x8x128xf32>,
    return
  }
  func.func @transform_0(%arg0: i32, %arg1: i32) -> (i32, i32) {
    %c1_i32 = arith.constant 1 : i32
    %0 = arith.muli %arg0, %c1_i32 : i32
    %1 = arith.addi %0, %arg1 : i32
    %c0_i32 = arith.constant 0 : i32
    %c0_i32_0 = arith.constant 0 : i32
    return %1, %c0_i32 : i32, i32
  }
  func.func @transform_1(%arg0: i32, %arg1: i32) -> (i32, i32) {
    %c1_i32 = arith.constant 1 : i32
    %0 = arith.muli %arg0, %c1_i32 : i32
    %1 = arith.addi %0, %arg1 : i32
    %c0_i32 = arith.constant 0 : i32
    %c0_i32_0 = arith.constant 0 : i32
    return %1, %c0_i32 : i32, i32
  }
  func.func @transform_2(%arg0: i32, %arg1: i32) -> (i32, i32, i32) {
    %c0_i32 = arith.constant 0 : i32
    %c0_i32_0 = arith.constant 0 : i32
    %c0_i32_1 = arith.constant 0 : i32
    return %arg0, %c0_i32, %c0_i32_0 : i32, i32, i32
  }
  func.func @transform_3(%arg0: i32, %arg1: i32) -> (i32, i32, i32) {
    %c0_i32 = arith.constant 0 : i32
    %c0_i32_0 = arith.constant 0 : i32
    %c0_i32_1 = arith.constant 0 : i32
    return %arg0, %c0_i32, %c0_i32_0 : i32, i32, i32
  }
  func.func @transform_4(%arg0: i32, %arg1: i32) -> (i32, i32, i32) {
    %c0_i32 = arith.constant 0 : i32
    %c0_i32_0 = arith.constant 0 : i32
    %c0_i32_1 = arith.constant 0 : i32
    return %arg0, %c0_i32, %c0_i32_0 : i32, i32, i32
  }
}

</mosaic_0001>

<llo_original>
// kernel: tpu_custom_call.1
$region0: #{tpu_custom_call.1}
  #allocation0 [shape = 'u32[]', space=smem, size = 0x4, offset = 0x4, fixed_abs, tag = 'smem constant byte address 0x4 - core index']
  #allocation1 [shape = 'u32[144,128]{1,0:T(1,128)}', space=vmem, size = 0x12000, scoped, tag = 'internal scratch']
  %s0 = inlined_call_operand.hbm [shape: f32[16,128], index: 0, kind: input, shape index: {}]
  %s1 = inlined_call_operand.hbm [shape: f32[16,128], index: 1, kind: input, shape index: {}]
  %s2 = inlined_call_operand.hbm [shape: f32[1,8,128], index: 2, kind: output, shape index: {0}]
  %s3 = inlined_call_operand.hbm [shape: f32[1,8,128], index: 3, kind: output, shape index: {1}]
  %s4 = inlined_call_operand.hbm [shape: f32[1,8,128], index: 4, kind: output, shape index: {2}]
  %5 = xla_tuple %s2, %s3, %s4
  %s6 = sld [smem:[#allocation0]]
  $region46: #{tpu_custom_call.1} parent=0
    _
  %s8 = ssub.s32 1, %s6
  %s9 = scalar_select 0, %s8, %s6
  $region1: #{tpu_custom_call.1} parent=0
    #allocation2 [shape = 'u8[8192]{0}', space=vmem, size = 0x2000, scoped, tag = 'input window, operand 0, single buffered']
    #allocation3 [shape = 's32[1]{0}', space=sflag, size = 0x4, scoped, tag = 'scoped memory for tpu_custom_call.1']
    #allocation4 [shape = 's32[1]{0}', space=sflag, size = 0x4, scoped, tag = 'scoped memory for tpu_custom_call.1']
    #allocation5 [shape = 'u8[8192]{0}', space=vmem, size = 0x2000, scoped, tag = 'input window, operand 1, single buffered']
    #allocation6 [shape = 's32[1]{0}', space=sflag, size = 0x4, scoped, tag = 'scoped memory for tpu_custom_call.1']
    #allocation7 [shape = 'u8[4096]{0}', space=vmem, size = 0x1000, scoped, tag = 'output window, operand 0, single buffered']
    #allocation8 [shape = 'u8[4096]{0}', space=vmem, size = 0x1000, scoped, tag = 'output window, operand 1, single buffered']
    #allocation9 [shape = 's32[1]{0}', space=sflag, size = 0x4, scoped, tag = 'scoped memory for tpu_custom_call.1']
    #allocation10 [shape = 'u8[4096]{0}', space=vmem, size = 0x1000, scoped, tag = 'output window, operand 2, single buffered']
    %10 = vsyncpa [#allocation3], 0
    %11 = vsyncpa [#allocation6], 0
    %12 = vsyncpa [#allocation4], 0
    %13 = vsyncpa [#allocation9], 0
    // Predicated region
    $region2: #{tpu_custom_call.1} parent=1 // pred_check
      _
    $region3: #{tpu_custom_call.1} parent=1 // pred_check_branch
      %15 = sbr.rel (0) target = $region5
    $region4: #{tpu_custom_call.1} parent=1 // pred_region
      %s16 = sadd.s32 0, 0
      %s17 = smul.u32 2, %s16
      %s19 = ssub.s32 256, 256
      %20 = vsyncadd [#allocation3], %s19
      %s21 = smul.addr %s17, 128
      %s22 = scalar_lea.hbm %s0, %s21
      %s23 = sshll.u32 [#allocation2], 4
      %s24 = int_to_ptr.vmem [resolvable:$true] %s23
      %29 = dma.hbm_to_vmem [thread:$0]  %s22, 256, %s24, [#allocation3], 128, 128, 8
    $region5: #{tpu_custom_call.1} parent=1 // pred_fallthru
      _
    // Predicated region
    $region6: #{tpu_custom_call.1} parent=1 // pred_check
      _
    $region7: #{tpu_custom_call.1} parent=1 // pred_check_branch
      %31 = sbr.rel (0) target = $region9
    $region8: #{tpu_custom_call.1} parent=1 // pred_region
      %s32 = sadd.s32 0, 0
      %s33 = smul.u32 2, %s32
      %s35 = ssub.s32 256, 256
      %36 = vsyncadd [#allocation6], %s35
      %s37 = smul.addr %s33, 128
      %s38 = scalar_lea.hbm %s1, %s37
      %s39 = sshll.u32 [#allocation5], 4
      %s40 = int_to_ptr.vmem [resolvable:$true] %s39
      %45 = dma.hbm_to_vmem [thread:$0]  %s38, 256, %s40, [#allocation6], 128, 128, 8
    $region9: #{tpu_custom_call.1} parent=1 // pred_fallthru
      _
    // Predicated region
    $region10: #{tpu_custom_call.1} parent=1 // pred_check
      _
    $region11: #{tpu_custom_call.1} parent=1 // pred_check_branch
      %47 = sbr.rel (0) target = $region13
    $region12: #{tpu_custom_call.1} parent=1 // pred_region
      %48 = dma.done [#allocation3], 256
    $region13: #{tpu_custom_call.1} parent=1 // pred_fallthru
      _
    // Predicated region
    $region14: #{tpu_custom_call.1} parent=1 // pred_check
      _
    $region15: #{tpu_custom_call.1} parent=1 // pred_check_branch
      %50 = sbr.rel (0) target = $region17
    $region16: #{tpu_custom_call.1} parent=1 // pred_region
      %51 = dma.done [#allocation6], 256
    $region17: #{tpu_custom_call.1} parent=1 // pred_fallthru
      _
    %s52 = sadd.s32 0, 0
    %s53 = smul.u32 2, %s52
    %s54 = sadd.s32 0, 0
    %s55 = smul.u32 2, %s54
    %p56 = scmp.eq.s32.totalorder 0, 0
    // Predicated region
    $region18: #{tpu_custom_call.1} parent=1 // pred_check
      %p57 = pneg %p56
    $region19: #{tpu_custom_call.1} parent=1 // pred_check_branch
      %59 = sbr.rel (%p57) target = $region21
    $region20: #{tpu_custom_call.1} parent=1 // pred_region
      %60 = vst [vmem:[#allocation7] sm:$0xff] 0.0
      %61 = vst [vmem:[#allocation8] sm:$0xff] 0.0
      %62 = vst [vmem:[#allocation10] sm:$0xff] 0.0
    $region21: #{tpu_custom_call.1} parent=1 // pred_fallthru
      _
    %v63 = vld [vmem:[#allocation2] sm:$0xff]
    %v64 = vld [vmem:[#allocation2 + $0x8] sm:$0xff]
    %v65 = vld [vmem:[#allocation5] sm:$0xff]
    %v66 = vld [vmem:[#allocation5 + $0x8] sm:$0xff]
    %v67 = vsub.f32 %v63, %v65
    %v68 = vsub.f32 %v64, %v66
    %v69 = vmul.f32 %v67, %v67
    %v70 = vmul.f32 %v68, %v68
    %v71 = vand.u32 2147483647, %v67
    %v72 = vand.u32 2147483647, %v68
    %v73 = vmax.f32 %v63, 0.0
    %v74 = vmax.f32 %v64, 0.0
    %v75 = vmul.f32 %v63, %v65
    %v76 = vmul.f32 %v64, %v66
    %v77 = vsub.f32 %v73, %v75
    %v78 = vsub.f32 %v74, %v76
    %v79 = vand.u32 2147483647, %v63
    %v80 = vand.u32 2147483647, %v64
    %v81 = vsub.f32 0.0, %v79
    %v82 = vsub.f32 0.0, %v80
    %v83 = vmul.f32 %v81, 1.442695
    %v84 = vpow.pop %v83
    %v85 = vmul.f32 %v82, 1.442695
    %v86 = vpow.pop %v85
    %v87 = vadd.f32 %v84, 1.0
    %v88 = vlog2.pop %v87
    %v89 = vmul.f32 %v88, 0.6931472
    %v90 = vmul.f32 -0.5, %v84
    %v91 = vadd.f32 %v90, 1.0
    %v92 = vmul.f32 %v91, %v84
    %v93 = vand.u32 2147483647, %v84
    %vm94 = vcmp.lt.f32.partialorder %v93, 0.0004427343
    %v95 = vsel %vm94, %v92, %v89
    %v96 = vadd.f32 %v86, 1.0
    %v97 = vlog2.pop %v96
    %v98 = vmul.f32 %v97, 0.6931472
    %v99 = vmul.f32 -0.5, %v86
    %v100 = vadd.f32 %v99, 1.0
    %v101 = vmul.f32 %v100, %v86
    %v102 = vand.u32 2147483647, %v86
    %vm103 = vcmp.lt.f32.partialorder %v102, 0.0004427343
    %v104 = vsel %vm103, %v101, %v98
    %v105 = vadd.f32 %v77, %v95
    %v106 = vadd.f32 %v78, %v104
    %v107 = vld [vmem:[#allocation7] sm:$0xff]
    %v108 = vadd.f32 %v69, %v70
    %v109 = vadd.f32 %v107, %v108
    %110 = vst [vmem:[#allocation7] sm:$0xff] %v109
    %v111 = vld [vmem:[#allocation8] sm:$0xff]
    %v112 = vadd.f32 %v71, %v72
    %v113 = vadd.f32 %v111, %v112
    %114 = vst [vmem:[#allocation8] sm:$0xff] %v113
    %v115 = vld [vmem:[#allocation10] sm:$0xff]
    %v116 = vadd.f32 %v105, %v106
    %v117 = vadd.f32 %v115, %v116
    %118 = vst [vmem:[#allocation10] sm:$0xff] %v117
    // Predicated region
    $region22: #{tpu_custom_call.1} parent=1 // pred_check
      _
    $region23: #{tpu_custom_call.1} parent=1 // pred_check_branch
      %120 = sbr.rel (0) target = $region25
    $region24: #{tpu_custom_call.1} parent=1 // pred_region
      %s122 = ssub.s32 128, 128
      %123 = vsyncadd [#allocation4], %s122
      %s125 = sshll.u32 [#allocation7], 4
      %s126 = int_to_ptr.vmem [resolvable:$true] %s125
      %128 = dma.vmem_to_hbm [thread:$0]  %s126, 128, %s2, [#allocation4]
    $region25: #{tpu_custom_call.1} parent=1 // pred_fallthru
      _
    // Predicated region
    $region26: #{tpu_custom_call.1} parent=1 // pred_check
      _
    $region27: #{tpu_custom_call.1} parent=1 // pred_check_branch
      %130 = sbr.rel (0) target = $region29
    $region28: #{tpu_custom_call.1} parent=1 // pred_region
      %s132 = ssub.s32 128, 128
      %133 = vsyncadd [#allocation9], %s132
      %s135 = sshll.u32 [#allocation8], 4
      %s136 = int_to_ptr.vmem [resolvable:$true] %s135
      %138 = dma.vmem_to_hbm [thread:$0]  %s136, 128, %s3, [#allocation9]
    $region29: #{tpu_custom_call.1} parent=1 // pred_fallthru
      _
    // Predicated region
    $region30: #{tpu_custom_call.1} parent=1 // pred_check
      _
    $region31: #{tpu_custom_call.1} parent=1 // pred_check_branch
      %140 = sbr.rel (0) target = $region33
    $region32: #{tpu_custom_call.1} parent=1 // pred_region
      %s142 = ssub.s32 128, 128
      %143 = vsyncadd [#allocation9], %s142
      %s145 = sshll.u32 [#allocation10], 4
      %s146 = int_to_ptr.vmem [resolvable:$true] %s145
      %148 = dma.vmem_to_hbm [thread:$0]  %s146, 128, %s4, [#allocation9]
    $region33: #{tpu_custom_call.1} parent=1 // pred_fallthru
      _
    // Predicated region
    $region34: #{tpu_custom_call.1} parent=1 // pred_check
      _
    $region35: #{tpu_custom_call.1} parent=1 // pred_check_branch
      %150 = sbr.rel (0) target = $region37
    $region36: #{tpu_custom_call.1} parent=1 // pred_region
      %151 = dma.done [#allocation4], 128
    $region37: #{tpu_custom_call.1} parent=1 // pred_fallthru
      _
    // Predicated region
    $region38: #{tpu_custom_call.1} parent=1 // pred_check
      _
    $region39: #{tpu_custom_call.1} parent=1 // pred_check_branch
      %153 = sbr.rel (0) target = $region41
    $region40: #{tpu_custom_call.1} parent=1 // pred_region
      %154 = dma.done [#allocation9], 128
    $region41: #{tpu_custom_call.1} parent=1 // pred_fallthru
      _
    // Predicated region
    $region42: #{tpu_custom_call.1} parent=1 // pred_check
      _
    $region43: #{tpu_custom_call.1} parent=1 // pred_check_branch
      %156 = sbr.rel (0) target = $region45
    $region44: #{tpu_custom_call.1} parent=1 // pred_region
      %157 = dma.done [#allocation9], 128
    $region45: #{tpu_custom_call.1} parent=1 // pred_fallthru
      _
    %158 = vsyncpa [#allocation3], 1
    %159 = vsyncpa [#allocation6], 1
    %160 = vsyncpa [#allocation4], 1
    %161 = vsyncpa [#allocation9], 1

</llo_original>
